<compile_context>
chip_gen: v5e
topology: v5e:2x2
jax: 0.10.0
libtpu: 0.0.40
codegen_flags: <defaults>
</compile_context>

<pallas_src>
import jax
import jax.numpy as jnp
from jax.experimental import pallas as pl
from jax.experimental.pallas import tpu as pltpu


def _round_up(v, m):
    return (v + m - 1) // m * m


def attentive_fp_kernel(x_ref, mask_ref, pool_ref, w1_ref, wbig_ref, b_ref, out_ref):
    Hp = w1_ref.shape[1]
    G = pool_ref.shape[0]

    mask_bias = mask_ref[...]                 # [N, N] bf16 additive attention mask (0 / -1e30)
    attT = wbig_ref[:, 5 * Hp:6 * Hp]         # [Hp, Hp] bf16; cols 0..3 = a1_dst,a1_src,a2_dst,a2_src

    def gat_layer(h_bf16, w_bf16, col, bias_row):
        # PyG GATConv semantics: heads=1, concat=True, negative_slope=0.2,
        # add_self_loops handled in the mask, attention-dropout=0, bias added post-aggregation.
        wx = jnp.dot(h_bf16, w_bf16, preferred_element_type=jnp.float32)        # [N, Hp]
        wx_bf = wx.astype(jnp.bfloat16)

        # Both score terms from a single MXU dot (idle MXU slot, no XLU lane reduces).
        s = jnp.dot(wx_bf, attT, preferred_element_type=jnp.float32)            # [N, Hp]
        adst = s[:, col:col + 1]                                                # [N, 1] dest term
        asrc = s[:, col + 1:col + 2]                                            # [N, 1] source term

        e = adst + asrc.T                                                       # e[i, j]: edge j -> i
        e = jnp.maximum(e, 0.2 * e)                                             # LeakyReLU(0.2)
        e = e + mask_bias                                                       # additive mask
        e = e - jnp.max(e, axis=-1, keepdims=True)
        p = jnp.exp(e)                                                          # masked -> underflow 0
        inv = pl.reciprocal(jnp.sum(p, axis=-1, keepdims=True), approx=True)    # EUP, not VALU divide
        alpha = (p * inv).astype(jnp.bfloat16)                                  # softmax over in-edges

        msg = jnp.dot(alpha, wx_bf, preferred_element_type=jnp.float32)         # [N, Hp]
        return jnp.maximum(msg + bias_row, 0.0)                                 # conv bias + ReLU

    # --- GAT layer 1 + ReLU, GAT layer 2 + ReLU ---
    # TODO(synk): nn.Dropout(0.5) after each layer uses eval (identity) semantics; no RNG drop emitted.
    h = gat_layer(x_ref[...], w1_ref[...], 0, b_ref[0:1, :])
    h = gat_layer(h.astype(jnp.bfloat16), wbig_ref[:, 0:Hp], 2, b_ref[1:2, :])

    # --- nn.GRU with seq_len = 1 and h0 = 0 (W_hh @ h0 == 0; only hidden biases survive) ---
    # One fused gate matmul, columns ordered [r | z | n]; b_hr/b_hz pre-folded into rows 2/3.
    gates = jnp.dot(h.astype(jnp.bfloat16), wbig_ref[:, Hp:4 * Hp],
                    preferred_element_type=jnp.float32)                          # [N, 3*Hp]
    r = jax.nn.sigmoid(gates[:, 0:Hp] + b_ref[2:3, :])
    z = jax.nn.sigmoid(gates[:, Hp:2 * Hp] + b_ref[3:4, :])
    n = jnp.tanh(gates[:, 2 * Hp:3 * Hp] + b_ref[4:5, :] + r * b_ref[5:6, :])
    h = (1.0 - z) * n                                                            # (1-z)*n + z*h0, h0=0

    # --- global_add_pool via one-hot matmul (kept f32 so the sum stays exact) ---
    pooled = jnp.dot(pool_ref[...], h, preferred_element_type=jnp.float32)       # [G, Hp]

    # --- super node: mean over graphs -> Linear -> ReLU ---
    sn = jnp.sum(pooled, axis=0, keepdims=True) * jnp.float32(1.0 / G)           # [1, Hp]
    sn = jnp.dot(sn.astype(jnp.bfloat16), wbig_ref[:, 4 * Hp:5 * Hp],
                 preferred_element_type=jnp.float32) + b_ref[6:7, :]
    sn = jnp.maximum(sn, 0.0)

    # --- cat([pooled, super_node.repeat(G, 1)], dim=1): two lane-tile-aligned stores ---
    out_ref[:, 0:Hp] = pooled
    out_ref[:, Hp:2 * Hp] = jnp.broadcast_to(sn, (G, Hp))


def init_params(key, in_channels, hidden):
    """Random parameters matching AttentiveFP(in_channels, hidden, num_layers=2)."""
    ks = jax.random.split(key, 11)
    s = 0.1
    f32 = jnp.float32
    return {
        # GATConv 1 / 2 (lin weight pre-transposed to [in, out]; att vectors; zero bias)
        "w1": jax.random.normal(ks[0], (in_channels, hidden), f32) * s,
        "a1_src": jax.random.normal(ks[1], (hidden,), f32) * s,
        "a1_dst": jax.random.normal(ks[2], (hidden,), f32) * s,
        "b1": jnp.zeros((hidden,), f32),
        "w2": jax.random.normal(ks[3], (hidden, hidden), f32) * s,
        "a2_src": jax.random.normal(ks[4], (hidden,), f32) * s,
        "a2_dst": jax.random.normal(ks[5], (hidden,), f32) * s,
        "b2": jnp.zeros((hidden,), f32),
        # GRU weight_ih pre-transposed to [H, 3H], column blocks ordered r|z|n
        "w_ih": jax.random.normal(ks[6], (hidden, 3 * hidden), f32) * s,
        "b_ih": jax.random.normal(ks[7], (3 * hidden,), f32) * s,   # b_ir|b_iz|b_in
        "b_hh": jax.random.normal(ks[8], (3 * hidden,), f32) * s,   # b_hr|b_hz|b_hn
        # super_node_fc (nn.Linear weight pre-transposed to [in, out])
        "w_sn": jax.random.normal(ks[9], (hidden, hidden), f32) * s,
        "b_sn": jax.random.normal(ks[10], (hidden,), f32) * s,
    }


def pack_params(p, hidden):
    """Zero-pad hidden -> Hp (multiple of 128) and pack into 3 kernel operands."""
    Hp = _round_up(hidden, 128)
    dH = Hp - hidden
    bf16 = jnp.bfloat16

    pad_v = lambda v: jnp.pad(v, (0, dH))                    # [H]   -> [Hp]
    pad_c = lambda m: jnp.pad(m, ((0, 0), (0, dH)))          # [r,H] -> [r,Hp]
    pad_s = lambda m: jnp.pad(m, ((0, dH), (0, dH)))         # [H,H] -> [Hp,Hp]

    # GRU: pad each gate column block separately so r|z|n land at 0:Hp / Hp:2Hp / 2Hp:3Hp.
    w_ih = p["w_ih"].reshape(hidden, 3, hidden)
    wg = jnp.pad(w_ih, ((0, dH), (0, 0), (0, dH))).reshape(Hp, 3 * Hp)
    b_ih = p["b_ih"].reshape(3, hidden)
    b_hh = p["b_hh"].reshape(3, hidden)

    # Attention vectors as columns 0..3 of a [Hp, Hp] slab (rest zero).
    att = jnp.stack([pad_v(p["a1_dst"]), pad_v(p["a1_src"]),
                     pad_v(p["a2_dst"]), pad_v(p["a2_src"])], axis=1)      # [Hp, 4]
    att = jnp.pad(att, ((0, 0), (0, Hp - 4)))                              # [Hp, Hp]

    # One bf16 weight slab: [ w2 | w_gru(3Hp) | w_sn | att ] -> [Hp, 6*Hp]
    wbig = jnp.concatenate([pad_s(p["w2"]), wg, pad_s(p["w_sn"]), att], axis=1).astype(bf16)

    # Packed bias table [7, Hp] f32: gat1, gat2, r(=b_ir+b_hr), z(=b_iz+b_hz), b_in, b_hn, b_sn.
    b = jnp.stack([pad_v(p["b1"]),
                   pad_v(p["b2"]),
                   pad_v(b_ih[0] + b_hh[0]),
                   pad_v(b_ih[1] + b_hh[1]),
                   pad_v(b_ih[2]),
                   pad_v(b_hh[2]),
                   pad_v(p["b_sn"])], axis=0)

    w1 = pad_c(p["w1"]).astype(bf16)                                       # [in_c, Hp]
    return {"w1": w1, "wbig": wbig, "b": b}, Hp


def attentive_fp_forward(x, edge_index, batch, num_graphs, params, hidden):
    N = x.shape[0]
    packed, Hp = pack_params(params, hidden)

    # glue: additive attention mask (0 for edge j->i incl. self-loops, -1e30 otherwise), bf16.
    src, dst = edge_index[0], edge_index[1]
    adj = jnp.zeros((N, N), jnp.bool_).at[dst, src].set(True)
    adj = adj.at[jnp.arange(N), jnp.arange(N)].set(True)        # add_self_loops=True
    mask_bias = jnp.where(adj, 0.0, -1e30).astype(jnp.bfloat16)

    # glue: one-hot pooling matrix so global_add_pool == pool @ h.
    pool = jax.nn.one_hot(batch, num_graphs, dtype=jnp.float32).T          # [G, N]

    args = (x.astype(jnp.bfloat16), mask_bias, pool,
            packed["w1"], packed["wbig"], packed["b"])

    vmem = pl.BlockSpec(memory_space=pltpu.MemorySpace.VMEM)
    out = pl.pallas_call(
        attentive_fp_kernel,
        out_shape=jax.ShapeDtypeStruct((num_graphs, 2 * Hp), jnp.float32),
        in_specs=[vmem] * len(args),
        out_specs=vmem,
    )(*args)

    # strip hidden-dim padding -> [G, 2*hidden] == torch.cat([pooled, super.repeat(G,1)], dim=1)
    return jnp.concatenate([out[:, :hidden], out[:, Hp:Hp + hidden]], axis=1)


if __name__ == "__main__":
    N = 16            # total nodes
    IN_C = 8          # in_channels
    HID = 32          # hidden_channels (padded to 128 internally)
    G = 2             # graphs in the batch
    E = 40            # number of edges

    key = jax.random.PRNGKey(0)
    kx, ks, kd, kp = jax.random.split(key, 4)

    x = jax.random.normal(kx, (N, IN_C), jnp.float32)
    src = jax.random.randint(ks, (E,), 0, N)
    dst = jax.random.randint(kd, (E,), 0, N)
    edge_index = jnp.stack([src, dst], axis=0)                      # [2, E]
    batch = jnp.repeat(jnp.arange(G, dtype=jnp.int32), N // G)      # [N]

    params = init_params(kp, IN_C, HID)

    out = attentive_fp_forward(x, edge_index, batch, G, params, HID)
    out = jax.block_until_ready(out)
    assert out.shape == (G, 2 * HID), out.shape
    print("KERNEL_OK")
</pallas_src>

<mosaic_0001>
module attributes {stable_mosaic.version = 11 : i64} {
  func.func @attentive_fp_kernel(%arg0: memref<16x8xbf16, #tpu.memory_space<vmem>>, %arg1: memref<16x16xbf16, #tpu.memory_space<vmem>>, %arg2: memref<2x16xf32, #tpu.memory_space<vmem>>, %arg3: memref<8x128xbf16, #tpu.memory_space<vmem>>, %arg4: memref<128x768xbf16, #tpu.memory_space<vmem>>, %arg5: memref<7x128xf32, #tpu.memory_space<vmem>>, %arg6: memref<2x256xf32, #tpu.memory_space<vmem>>) attributes {dimension_semantics = [], scalar_prefetch = 0 : i64, scratch_operands = 0 : i64, tpu.core_type = #tpu.core_type<tc>} {
    %c0 = arith.constant 0 : index
    %c0_0 = arith.constant 0 : index
    %0 = vector.load %arg1[%c0, %c0_0] : memref<16x16xbf16, #tpu.memory_space<vmem>>, vector<16x16xbf16>
    %c0_1 = arith.constant 0 : index
    %c640 = arith.constant 640 : index
    %1 = vector.load %arg4[%c0_1, %c640] : memref<128x768xbf16, #tpu.memory_space<vmem>>, vector<128x128xbf16>
    %c0_2 = arith.constant 0 : index
    %c0_3 = arith.constant 0 : index
    %2 = vector.load %arg0[%c0_2, %c0_3] : memref<16x8xbf16, #tpu.memory_space<vmem>>, vector<16x8xbf16>
    %c0_4 = arith.constant 0 : index
    %c0_5 = arith.constant 0 : index
    %3 = vector.load %arg3[%c0_4, %c0_5] : memref<8x128xbf16, #tpu.memory_space<vmem>>, vector<8x128xbf16>
    %c0_6 = arith.constant 0 : index
    %c0_7 = arith.constant 0 : index
    %4 = vector.load %arg5[%c0_6, %c0_7] : memref<7x128xf32, #tpu.memory_space<vmem>>, vector<1x128xf32>
    %cst = arith.constant dense<0.000000e+00> : vector<16x128xf32>
    %5 = tpu.matmul %2, %3, %cst {dimension_numbers = #tpu.dot_dimension_numbers<[1], [0], [0], [1], [0, 0, 1, 1], [], []>} : vector<16x8xbf16>, vector<8x128xbf16>, vector<16x128xf32> -> vector<16x128xf32>
    %6 = arith.truncf %5 : vector<16x128xf32> to vector<16x128xbf16>
    %cst_8 = arith.constant dense<0.000000e+00> : vector<16x128xf32>
    %7 = tpu.matmul %6, %1, %cst_8 {dimension_numbers = #tpu.dot_dimension_numbers<[1], [0], [0], [1], [0, 0, 1, 1], [], []>} : vector<16x128xbf16>, vector<128x128xbf16>, vector<16x128xf32> -> vector<16x128xf32>
    %8 = vector.extract_strided_slice %7 {offsets = [0, 0], sizes = [16, 1], strides = [1, 1]} : vector<16x128xf32> to vector<16x1xf32>
    %9 = vector.extract_strided_slice %7 {offsets = [0, 1], sizes = [16, 1], strides = [1, 1]} : vector<16x128xf32> to vector<16x1xf32>
    %10 = tpu.transpose %9, [1, 0] : vector<16x1xf32> -> vector<1x16xf32>
    %11 = vector.broadcast %8 : vector<16x1xf32> to vector<16x16xf32>
    %12 = vector.broadcast %10 : vector<1x16xf32> to vector<16x16xf32>
    %13 = arith.addf %11, %12 : vector<16x16xf32>
    %cst_9 = arith.constant 2.000000e-01 : f32
    %14 = vector.broadcast %cst_9 : f32 to vector<16x16xf32>
    %15 = arith.mulf %14, %13 : vector<16x16xf32>
    %16 = arith.maximumf %13, %15 : vector<16x16xf32>
    %17 = arith.extf %0 : vector<16x16xbf16> to vector<16x16xf32>
    %18 = arith.addf %16, %17 : vector<16x16xf32>
    %cst_10 = arith.constant dense<0xFF800000> : vector<16xf32>
    %19 = vector.multi_reduction <maximumf>, %18, %cst_10 [1] : vector<16x16xf32> to vector<16xf32>
    %20 = vector.shape_cast %19 : vector<16xf32> to vector<16x1xf32>
    %21 = vector.broadcast %20 : vector<16x1xf32> to vector<16x16xf32>
    %22 = arith.subf %18, %21 : vector<16x16xf32>
    %23 = math.exp %22 : vector<16x16xf32>
    %cst_11 = arith.constant dense<0.000000e+00> : vector<16xf32>
    %24 = vector.multi_reduction <add>, %23, %cst_11 [1] : vector<16x16xf32> to vector<16xf32>
    %25 = vector.shape_cast %24 : vector<16xf32> to vector<16x1xf32>
    %26 = tpu.reciprocal %25 {approx = true} : vector<16x1xf32> -> vector<16x1xf32>
    %27 = vector.broadcast %26 : vector<16x1xf32> to vector<16x16xf32>
    %28 = arith.mulf %23, %27 : vector<16x16xf32>
    %29 = arith.truncf %28 : vector<16x16xf32> to vector<16x16xbf16>
    %cst_12 = arith.constant dense<0.000000e+00> : vector<16x128xf32>
    %30 = tpu.matmul %29, %6, %cst_12 {dimension_numbers = #tpu.dot_dimension_numbers<[1], [0], [0], [1], [0, 0, 1, 1], [], []>} : vector<16x16xbf16>, vector<16x128xbf16>, vector<16x128xf32> -> vector<16x128xf32>
    %31 = vector.broadcast %4 : vector<1x128xf32> to vector<16x128xf32>
    %32 = arith.addf %30, %31 : vector<16x128xf32>
    %cst_13 = arith.constant 0.000000e+00 : f32
    %33 = vector.broadcast %cst_13 : f32 to vector<16x128xf32>
    %34 = arith.maximumf %32, %33 : vector<16x128xf32>
    %35 = arith.truncf %34 : vector<16x128xf32> to vector<16x128xbf16>
    %c0_14 = arith.constant 0 : index
    %c0_15 = arith.constant 0 : index
    %36 = vector.load %arg4[%c0_14, %c0_15] : memref<128x768xbf16, #tpu.memory_space<vmem>>, vector<128x128xbf16>
    %c1 = arith.constant 1 : index
    %c0_16 = arith.constant 0 : index
    %37 = vector.load %arg5[%c1, %c0_16] : memref<7x128xf32, #tpu.memory_space<vmem>>, vector<1x128xf32>
    %cst_17 = arith.constant dense<0.000000e+00> : vector<16x128xf32>
    %38 = tpu.matmul %35, %36, %cst_17 {dimension_numbers = #tpu.dot_dimension_numbers<[1], [0], [0], [1], [0, 0, 1, 1], [], []>} : vector<16x128xbf16>, vector<128x128xbf16>, vector<16x128xf32> -> vector<16x128xf32>
    %39 = arith.truncf %38 : vector<16x128xf32> to vector<16x128xbf16>
    %cst_18 = arith.constant dense<0.000000e+00> : vector<16x128xf32>
    %40 = tpu.matmul %39, %1, %cst_18 {dimension_numbers = #tpu.dot_dimension_numbers<[1], [0], [0], [1], [0, 0, 1, 1], [], []>} : vector<16x128xbf16>, vector<128x128xbf16>, vector<16x128xf32> -> vector<16x128xf32>
    %41 = vector.extract_strided_slice %40 {offsets = [0, 2], sizes = [16, 1], strides = [1, 1]} : vector<16x128xf32> to vector<16x1xf32>
    %42 = vector.extract_strided_slice %40 {offsets = [0, 3], sizes = [16, 1], strides = [1, 1]} : vector<16x128xf32> to vector<16x1xf32>
    %43 = tpu.transpose %42, [1, 0] : vector<16x1xf32> -> vector<1x16xf32>
    %44 = vector.broadcast %41 : vector<16x1xf32> to vector<16x16xf32>
    %45 = vector.broadcast %43 : vector<1x16xf32> to vector<16x16xf32>
    %46 = arith.addf %44, %45 : vector<16x16xf32>
    %cst_19 = arith.constant 2.000000e-01 : f32
    %47 = vector.broadcast %cst_19 : f32 to vector<16x16xf32>
    %48 = arith.mulf %47, %46 : vector<16x16xf32>
    %49 = arith.maximumf %46, %48 : vector<16x16xf32>
    %50 = arith.extf %0 : vector<16x16xbf16> to vector<16x16xf32>
    %51 = arith.addf %49, %50 : vector<16x16xf32>
    %cst_20 = arith.constant dense<0xFF800000> : vector<16xf32>
    %52 = vector.multi_reduction <maximumf>, %51, %cst_20 [1] : vector<16x16xf32> to vector<16xf32>
    %53 = vector.shape_cast %52 : vector<16xf32> to vector<16x1xf32>
    %54 = vector.broadcast %53 : vector<16x1xf32> to vector<16x16xf32>
    %55 = arith.subf %51, %54 : vector<16x16xf32>
    %56 = math.exp %55 : vector<16x16xf32>
    %cst_21 = arith.constant dense<0.000000e+00> : vector<16xf32>
    %57 = vector.multi_reduction <add>, %56, %cst_21 [1] : vector<16x16xf32> to vector<16xf32>
    %58 = vector.shape_cast %57 : vector<16xf32> to vector<16x1xf32>
    %59 = tpu.reciprocal %58 {approx = true} : vector<16x1xf32> -> vector<16x1xf32>
    %60 = vector.broadcast %59 : vector<16x1xf32> to vector<16x16xf32>
    %61 = arith.mulf %56, %60 : vector<16x16xf32>
    %62 = arith.truncf %61 : vector<16x16xf32> to vector<16x16xbf16>
    %cst_22 = arith.constant dense<0.000000e+00> : vector<16x128xf32>
    %63 = tpu.matmul %62, %39, %cst_22 {dimension_numbers = #tpu.dot_dimension_numbers<[1], [0], [0], [1], [0, 0, 1, 1], [], []>} : vector<16x16xbf16>, vector<16x128xbf16>, vector<16x128xf32> -> vector<16x128xf32>
    %64 = vector.broadcast %37 : vector<1x128xf32> to vector<16x128xf32>
    %65 = arith.addf %63, %64 : vector<16x128xf32>
    %cst_23 = arith.constant 0.000000e+00 : f32
    %66 = vector.broadcast %cst_23 : f32 to vector<16x128xf32>
    %67 = arith.maximumf %65, %66 : vector<16x128xf32>
    %68 = arith.truncf %67 : vector<16x128xf32> to vector<16x128xbf16>
    %c0_24 = arith.constant 0 : index
    %c128 = arith.constant 128 : index
    %69 = vector.load %arg4[%c0_24, %c128] : memref<128x768xbf16, #tpu.memory_space<vmem>>, vector<128x384xbf16>
    %cst_25 = arith.constant dense<0.000000e+00> : vector<16x384xf32>
    %70 = tpu.matmul %68, %69, %cst_25 {dimension_numbers = #tpu.dot_dimension_numbers<[1], [0], [0], [1], [0, 0, 1, 1], [], []>} : vector<16x128xbf16>, vector<128x384xbf16>, vector<16x384xf32> -> vector<16x384xf32>
    %71 = vector.extract_strided_slice %70 {offsets = [0, 0], sizes = [16, 128], strides = [1, 1]} : vector<16x384xf32> to vector<16x128xf32>
    %c2 = arith.constant 2 : index
    %c0_26 = arith.constant 0 : index
    %72 = vector.load %arg5[%c2, %c0_26] : memref<7x128xf32, #tpu.memory_space<vmem>>, vector<1x128xf32>
    %73 = vector.broadcast %72 : vector<1x128xf32> to vector<16x128xf32>
    %74 = arith.addf %71, %73 : vector<16x128xf32>
    %75 = arith.negf %74 : vector<16x128xf32>
    %76 = math.exp %75 : vector<16x128xf32>
    %cst_27 = arith.constant 1.000000e+00 : f32
    %77 = vector.broadcast %cst_27 : f32 to vector<16x128xf32>
    %78 = arith.addf %77, %76 : vector<16x128xf32>
    %79 = arith.divf %77, %78 : vector<16x128xf32>
    %80 = vector.extract_strided_slice %70 {offsets = [0, 128], sizes = [16, 128], strides = [1, 1]} : vector<16x384xf32> to vector<16x128xf32>
    %c3 = arith.constant 3 : index
    %c0_28 = arith.constant 0 : index
    %81 = vector.load %arg5[%c3, %c0_28] : memref<7x128xf32, #tpu.memory_space<vmem>>, vector<1x128xf32>
    %82 = vector.broadcast %81 : vector<1x128xf32> to vector<16x128xf32>
    %83 = arith.addf %80, %82 : vector<16x128xf32>
    %84 = arith.negf %83 : vector<16x128xf32>
    %85 = math.exp %84 : vector<16x128xf32>
    %cst_29 = arith.constant 1.000000e+00 : f32
    %86 = vector.broadcast %cst_29 : f32 to vector<16x128xf32>
    %87 = arith.addf %86, %85 : vector<16x128xf32>
    %88 = arith.divf %86, %87 : vector<16x128xf32>
    %89 = vector.extract_strided_slice %70 {offsets = [0, 256], sizes = [16, 128], strides = [1, 1]} : vector<16x384xf32> to vector<16x128xf32>
    %c4 = arith.constant 4 : index
    %c0_30 = arith.constant 0 : index
    %90 = vector.load %arg5[%c4, %c0_30] : memref<7x128xf32, #tpu.memory_space<vmem>>, vector<1x128xf32>
    %91 = vector.broadcast %90 : vector<1x128xf32> to vector<16x128xf32>
    %92 = arith.addf %89, %91 : vector<16x128xf32>
    %c5 = arith.constant 5 : index
    %c0_31 = arith.constant 0 : index
    %93 = vector.load %arg5[%c5, %c0_31] : memref<7x128xf32, #tpu.memory_space<vmem>>, vector<1x128xf32>
    %94 = vector.broadcast %93 : vector<1x128xf32> to vector<16x128xf32>
    %95 = arith.mulf %79, %94 : vector<16x128xf32>
    %96 = arith.addf %92, %95 : vector<16x128xf32>
    %97 = math.tanh %96 : vector<16x128xf32>
    %cst_32 = arith.constant 1.000000e+00 : f32
    %98 = vector.broadcast %cst_32 : f32 to vector<16x128xf32>
    %99 = arith.subf %98, %88 : vector<16x128xf32>
    %100 = arith.mulf %99, %97 : vector<16x128xf32>
    %c0_33 = arith.constant 0 : index
    %c0_34 = arith.constant 0 : index
    %101 = vector.load %arg2[%c0_33, %c0_34] : memref<2x16xf32, #tpu.memory_space<vmem>>, vector<2x16xf32>
    %cst_35 = arith.constant dense<0.000000e+00> : vector<2x128xf32>
    %102 = tpu.matmul %101, %100, %cst_35 {dimension_numbers = #tpu.dot_dimension_numbers<[1], [0], [0], [1], [0, 0, 1, 1], [], []>} : vector<2x16xf32>, vector<16x128xf32>, vector<2x128xf32> -> vector<2x128xf32>
    %cst_36 = arith.constant dense<0.000000e+00> : vector<128xf32>
    %103 = vector.multi_reduction <add>, %102, %cst_36 [0] : vector<2x128xf32> to vector<128xf32>
    %104 = vector.shape_cast %103 : vector<128xf32> to vector<1x128xf32>
    %cst_37 = arith.constant 5.000000e-01 : f32
    %105 = vector.broadcast %cst_37 : f32 to vector<1x128xf32>
    %106 = arith.mulf %104, %105 : vector<1x128xf32>
    %107 = arith.truncf %106 : vector<1x128xf32> to vector<1x128xbf16>
    %c0_38 = arith.constant 0 : index
    %c512 = arith.constant 512 : index
    %108 = vector.load %arg4[%c0_38, %c512] : memref<128x768xbf16, #tpu.memory_space<vmem>>, vector<128x128xbf16>
    %cst_39 = arith.constant dense<0.000000e+00> : vector<1x128xf32>
    %109 = tpu.matmul %107, %108, %cst_39 {dimension_numbers = #tpu.dot_dimension_numbers<[1], [0], [0], [1], [0, 0, 1, 1], [], []>} : vector<1x128xbf16>, vector<128x128xbf16>, vector<1x128xf32> -> vector<1x128xf32>
    %c6 = arith.constant 6 : index
    %c0_40 = arith.constant 0 : index
    %110 = vector.load %arg5[%c6, %c0_40] : memref<7x128xf32, #tpu.memory_space<vmem>>, vector<1x128xf32>
    %111 = arith.addf %109, %110 : vector<1x128xf32>
    %cst_41 = arith.constant 0.000000e+00 : f32
    %112 = vector.broadcast %cst_41 : f32 to vector<1x128xf32>
    %113 = arith.maximumf %111, %112 : vector<1x128xf32>
    %c0_42 = arith.constant 0 : index
    %c0_43 = arith.constant 0 : index
    %114 = vector.load %arg6[%c0_42, %c0_43] : memref<2x256xf32, #tpu.memory_space<vmem>>, vector<2x128xf32>
    tpu.vector_store %arg6[%c0_42, %c0_43], %102 {strides = array<i32>} : memref<2x256xf32, #tpu.memory_space<vmem>>, vector<2x128xf32>,
    %115 = vector.shape_cast %113 : vector<1x128xf32> to vector<1x128xf32>
    %116 = vector.broadcast %115 : vector<1x128xf32> to vector<2x128xf32>
    %c0_44 = arith.constant 0 : index
    %c128_45 = arith.constant 128 : index
    %117 = vector.load %arg6[%c0_44, %c128_45] : memref<2x256xf32, #tpu.memory_space<vmem>>, vector<2x128xf32>
    tpu.vector_store %arg6[%c0_44, %c128_45], %116 {strides = array<i32>} : memref<2x256xf32, #tpu.memory_space<vmem>>, vector<2x128xf32>,
    return
  }
}

</mosaic_0001>

<llo_original>
// kernel: tpu_custom_call.1
$region0: #{tpu_custom_call.1}
  #allocation0 [shape = 'u32[]', space=smem, size = 0x4, offset = 0x4, fixed_abs, tag = 'smem constant byte address 0x4 - core index']
  #allocation1 [shape = 'u32[72,128]{1,0:T(1,128)}', space=vmem, size = 0x9000, scoped, tag = 'internal scratch']
  %s0 = inlined_call_operand.vmem [shape: bf16[16,8], index: 0, kind: input, shape index: {}]
  %s1 = inlined_call_operand.vmem [shape: bf16[16,16], index: 1, kind: input, shape index: {}]
  %s2 = inlined_call_operand.hbm [shape: f32[2,16], index: 2, kind: input, shape index: {}]
  %s3 = inlined_call_operand.hbm [shape: bf16[8,128], index: 3, kind: input, shape index: {}]
  %s4 = inlined_call_operand.hbm [shape: bf16[128,768], index: 4, kind: input, shape index: {}]
  %s5 = inlined_call_operand.vmem [shape: f32[7,128], index: 5, kind: input, shape index: {}]
  %s6 = inlined_call_operand.hbm [shape: f32[2,256], index: 6, kind: output, shape index: {}]
  %s7 = sld [smem:[#allocation0]]
  $region46: #{tpu_custom_call.1} parent=0
    _
  %s9 = ssub.s32 1, %s7
  %s10 = scalar_select 0, %s9, %s7
  $region1: #{tpu_custom_call.1} parent=0
    #allocation2 [shape = 'u8[1024]{0}', space=vmem, size = 0x400, scoped, tag = 'input window, operand 2, single buffered']
    #allocation3 [shape = 's32[1]{0}', space=sflag, size = 0x4, scoped, tag = 'scoped memory for tpu_custom_call.1']
    #allocation4 [shape = 's32[1]{0}', space=sflag, size = 0x4, scoped, tag = 'scoped memory for tpu_custom_call.1']
    #allocation5 [shape = 'u8[2048]{0}', space=vmem, size = 0x800, scoped, tag = 'input window, operand 3, single buffered']
    #allocation6 [shape = 's32[1]{0}', space=sflag, size = 0x4, scoped, tag = 'scoped memory for tpu_custom_call.1']
    #allocation7 [shape = 'u8[196608]{0}', space=vmem, size = 0x30000, scoped, tag = 'input window, operand 4, single buffered']
    #allocation8 [shape = 'u8[2048]{0}', space=vmem, size = 0x800, scoped, tag = 'output window, operand 0, single buffered']
    %11 = vsyncpa [#allocation3], 0
    %12 = vsyncpa [#allocation6], 0
    %13 = vsyncpa [#allocation4], 0
    // Predicated region
    $region2: #{tpu_custom_call.1} parent=1 // pred_check
      _
    $region3: #{tpu_custom_call.1} parent=1 // pred_check_branch
      %15 = sbr.rel (0) target = $region5
    $region4: #{tpu_custom_call.1} parent=1 // pred_region
      _
    $region5: #{tpu_custom_call.1} parent=1 // pred_fallthru
      _
    // Predicated region
    $region6: #{tpu_custom_call.1} parent=1 // pred_check
      _
    $region7: #{tpu_custom_call.1} parent=1 // pred_check_branch
      %17 = sbr.rel (0) target = $region9
    $region8: #{tpu_custom_call.1} parent=1 // pred_region
      _
    $region9: #{tpu_custom_call.1} parent=1 // pred_fallthru
      _
    // Predicated region
    $region10: #{tpu_custom_call.1} parent=1 // pred_check
      _
    $region11: #{tpu_custom_call.1} parent=1 // pred_check_branch
      %19 = sbr.rel (0) target = $region13
    $region12: #{tpu_custom_call.1} parent=1 // pred_region
      %21 = vsyncadd [#allocation3], 0
      %s23 = sshll.u32 %s2, 4
      %s24 = int_to_ptr.hbm [resolvable:$true] %s23
      %s25 = sshll.u32 [#allocation2], 4
      %s26 = int_to_ptr.vmem [resolvable:$true] %s25
      %28 = dma.hbm_to_vmem [thread:$0]  %s24, 32, %s26, [#allocation3]
    $region13: #{tpu_custom_call.1} parent=1 // pred_fallthru
      _
    // Predicated region
    $region14: #{tpu_custom_call.1} parent=1 // pred_check
      _
    $region15: #{tpu_custom_call.1} parent=1 // pred_check_branch
      %30 = sbr.rel (0) target = $region17
    $region16: #{tpu_custom_call.1} parent=1 // pred_region
      %32 = vsyncadd [#allocation6], 0
      %s34 = sshll.u32 %s3, 4
      %s35 = int_to_ptr.hbm [resolvable:$true] %s34
      %s36 = sshll.u32 [#allocation5], 4
      %s37 = int_to_ptr.vmem [resolvable:$true] %s36
      %39 = dma.hbm_to_vmem [thread:$0]  %s35, 64, %s37, [#allocation6]
    $region17: #{tpu_custom_call.1} parent=1 // pred_fallthru
      _
    // Predicated region
    $region18: #{tpu_custom_call.1} parent=1 // pred_check
      _
    $region19: #{tpu_custom_call.1} parent=1 // pred_check_branch
      %41 = sbr.rel (0) target = $region21
    $region20: #{tpu_custom_call.1} parent=1 // pred_region
      %43 = vsyncadd [#allocation6], 0
      %s44 = sshll.u32 %s4, 4
      %s45 = int_to_ptr.hbm [resolvable:$true] %s44
      %s46 = sshll.u32 [#allocation7], 4
      %s47 = int_to_ptr.vmem [resolvable:$true] %s46
      %52 = dma.hbm_to_vmem [thread:$0]  %s45, 6144, %s47, [#allocation6], 384, 384, 24
    $region21: #{tpu_custom_call.1} parent=1 // pred_fallthru
      _
    // Predicated region
    $region22: #{tpu_custom_call.1} parent=1 // pred_check
      _
    $region23: #{tpu_custom_call.1} parent=1 // pred_check_branch
      %54 = sbr.rel (0) target = $region25
    $region24: #{tpu_custom_call.1} parent=1 // pred_region
      _
    $region25: #{tpu_custom_call.1} parent=1 // pred_fallthru
      _
    // Predicated region
    $region26: #{tpu_custom_call.1} parent=1 // pred_check
      _
    $region27: #{tpu_custom_call.1} parent=1 // pred_check_branch
      %56 = sbr.rel (0) target = $region29
    $region28: #{tpu_custom_call.1} parent=1 // pred_region
      %58 = dma.done [#allocation3], 32
    $region29: #{tpu_custom_call.1} parent=1 // pred_fallthru
      _
    // Predicated region
    $region30: #{tpu_custom_call.1} parent=1 // pred_check
      _
    $region31: #{tpu_custom_call.1} parent=1 // pred_check_branch
      %60 = sbr.rel (0) target = $region33
    $region32: #{tpu_custom_call.1} parent=1 // pred_region
      %62 = dma.done [#allocation6], 64
    $region33: #{tpu_custom_call.1} parent=1 // pred_fallthru
      _
    // Predicated region
    $region34: #{tpu_custom_call.1} parent=1 // pred_check
      _
    $region35: #{tpu_custom_call.1} parent=1 // pred_check_branch
      %64 = sbr.rel (0) target = $region37
    $region36: #{tpu_custom_call.1} parent=1 // pred_region
      %66 = dma.done [#allocation6], 6144
    $region37: #{tpu_custom_call.1} parent=1 // pred_fallthru
      _
    %v68 = vld [vmem:[%s1] sm:$0xf]
    %v69 = vld [vmem:[%s1 + $0x4] sm:$0xf]
    %v70 = vld [vmem:[#allocation7 + $0x14] sm:$0xf]
    %v71 = vld [vmem:[#allocation7 + $0x2c] sm:$0xf]
    %v72 = vld [vmem:[#allocation7 + $0x44] sm:$0xf]
    %v73 = vld [vmem:[#allocation7 + $0x5c] sm:$0xf]
    %v74 = vld [vmem:[#allocation7 + $0x74] sm:$0xf]
    %v75 = vld [vmem:[#allocation7 + $0x8c] sm:$0xf]
    %v76 = vld [vmem:[#allocation7 + $0xa4] sm:$0xf]
    %v77 = vld [vmem:[#allocation7 + $0xbc] sm:$0xf]
    %v78 = vld [vmem:[#allocation7 + $0xd4] sm:$0xf]
    %v79 = vld [vmem:[#allocation7 + $0xec] sm:$0xf]
    %v80 = vld [vmem:[#allocation7 + $0x104] sm:$0xf]
    %v81 = vld [vmem:[#allocation7 + $0x11c] sm:$0xf]
    %v82 = vld [vmem:[#allocation7 + $0x134] sm:$0xf]
    %v83 = vld [vmem:[#allocation7 + $0x14c] sm:$0xf]
    %v84 = vld [vmem:[#allocation7 + $0x164] sm:$0xf]
    %v85 = vld [vmem:[#allocation7 + $0x17c] sm:$0xf]
    %v86 = vld [vmem:[%s0] sm:$0xf]
    %v87 = vld [vmem:[%s0 + $0x4] sm:$0xf]
    %v88 = vld [vmem:[#allocation5] sm:$0xf]
    %v89 = vld [vmem:[%s5] sm:$0x1]
    %v92 = vunpack.c.l.b16 %v86
    %v93 = vunpack.c.l.b16 %v87
    %v94 = vpack.c.b16 %v93, %v92
    %vm95 = vcmask 64512
    %v97 = vsel %vm95, %v94, 0
    %vm99 = vcmask 1043456
    %v101 = vsel %vm99, %v88, 0
    %103 = vmatpush.bf16.msra.mxu0 0
    %104 = vmatpush.bf16.msra.mxu0 0
    %105 = vmatpush.bf16.msra.mxu0 0
    %106 = vmatpush.bf16.msra.mxu0 0
    %107 = vmatpush.bf16.msra.mxu0 0
    %108 = vmatpush.bf16.msra.mxu0 0
    %109 = vmatpush.bf16.msra.mxu0 0
    %110 = vmatpush.bf16.msra.mxu0 %v101
    %111 = vmatmul.bf16.gmra.mxu0 %v97
    %v112 = vpop.f32.mrf.mxu0
    %v113 = vadd.f32 0.0, %v112
    %v114 = vpop.f32.mrf.mxu0
    %v115 = vadd.f32 0.0, %v114
    %116 = vdwg.mxu0
    %v117 = vpack.c.bf16 %v115, %v113
    %v134 = vunpack.c.l.b16 %v70
    %v135 = vunpack.c.l.b16 %v71
    %v136 = vunpack.c.l.b16 %v72
    %v137 = vunpack.c.l.b16 %v73
    %v138 = vunpack.c.l.b16 %v74
    %v139 = vunpack.c.l.b16 %v75
    %v140 = vunpack.c.l.b16 %v76
    %v141 = vunpack.c.l.b16 %v77
    %v142 = vunpack.c.l.b16 %v78
    %v143 = vunpack.c.l.b16 %v79
    %v144 = vunpack.c.l.b16 %v80
    %v145 = vunpack.c.l.b16 %v81
    %v146 = vunpack.c.l.b16 %v82
    %v147 = vunpack.c.l.b16 %v83
    %v148 = vunpack.c.l.b16 %v84
    %v149 = vunpack.c.l.b16 %v85
    %v150 = vpack.c.b16 %v135, %v134
    %v151 = vpack.c.b16 %v137, %v136
    %v152 = vpack.c.b16 %v139, %v138
    %v153 = vpack.c.b16 %v141, %v140
    %v154 = vpack.c.b16 %v143, %v142
    %v155 = vpack.c.b16 %v145, %v144
    %v156 = vpack.c.b16 %v147, %v146
    %v157 = vpack.c.b16 %v149, %v148
    %166 = vmatpush.bf16.msra.mxu0 %v157
    %167 = vmatpush.bf16.msra.mxu0 %v156
    %168 = vmatpush.bf16.msra.mxu0 %v155
    %169 = vmatpush.bf16.msra.mxu0 %v154
    %170 = vmatpush.bf16.msra.mxu0 %v153
    %171 = vmatpush.bf16.msra.mxu0 %v152
    %172 = vmatpush.bf16.msra.mxu0 %v151
    %173 = vmatpush.bf16.msra.mxu0 %v150
    %174 = vmatmul.bf16.gmra.mxu0 %v117
    %v175 = vpop.f32.mrf.mxu0
    %v176 = vadd.f32 0.0, %v175
    %v177 = vpop.f32.mrf.mxu0
    %v178 = vadd.f32 0.0, %v177
    %179 = vdwg.mxu0
    %182 = vrot.lane.b32.xlu0 %v176, 127
    %v183 = vpop.permute.xlu0 %182
    %184 = vrot.lane.b32.xlu0 %v178, 127
    %v185 = vpop.permute.xlu0 %184
    %188 = vxpose.xlu0.b32.start [1/16] %v183, 128
    %189 = vxpose.xlu0.b32.cont [2/16] %v185, 128
    %190 = vxpose.xlu0.b32.cont [3/16] 0.0, 128
    %191 = vxpose.xlu0.b32.cont [4/16] 0.0, 128
    %192 = vxpose.xlu0.b32.cont [5/16] 0.0, 128
    %193 = vxpose.xlu0.b32.cont [6/16] 0.0, 128
    %194 = vxpose.xlu0.b32.cont [7/16] 0.0, 128
    %195 = vxpose.xlu0.b32.cont [8/16] 0.0, 128
    %196 = vxpose.xlu0.b32.cont [9/16] 0.0, 128
    %197 = vxpose.xlu0.b32.cont [10/16] 0.0, 128
    %198 = vxpose.xlu0.b32.cont [11/16] 0.0, 128
    %199 = vxpose.xlu0.b32.cont [12/16] 0.0, 128
    %200 = vxpose.xlu0.b32.cont [13/16] 0.0, 128
    %201 = vxpose.xlu0.b32.cont [14/16] 0.0, 128
    %202 = vxpose.xlu0.b32.cont [15/16] 0.0, 128
    %203 = vxpose.xlu0.b32.end [16/16] 0.0, 128
    %v204 = vpop.trf.xlu0
    %v205 = vpop.trf.xlu0
    %v206 = vpop.trf.xlu0
    %v207 = vpop.trf.xlu0
    %v208 = vpop.trf.xlu0
    %v209 = vpop.trf.xlu0
    %v210 = vpop.trf.xlu0
    %v211 = vpop.trf.xlu0
    %v212 = vpop.trf.xlu0
    %v213 = vpop.trf.xlu0
    %v214 = vpop.trf.xlu0
    %v215 = vpop.trf.xlu0
    %v216 = vpop.trf.xlu0
    %v217 = vpop.trf.xlu0
    %v218 = vpop.trf.xlu0
    %v219 = vpop.trf.xlu0
    %220 = vset.pattern.permute.xlu0 0
    %221 = vperm.xlu0 %220, %v176
    %v222 = vpop.permute.xlu0 %221
    %224 = vset.pattern.permute.xlu0 0
    %225 = vperm.xlu0 %224, %v178
    %v226 = vpop.permute.xlu0 %225
    %v228 = vperm.slane %v204, 0
    %v229 = vadd.f32 %v222, %v228
    %v230 = vadd.f32 %v226, %v228
    %v231 = vmul.f32 %v229, 0.2
    %v232 = vmul.f32 %v230, 0.2
    %v233 = vmax.f32 %v229, %v231
    %v234 = vmax.f32 %v230, %v232
    %v235 = vunpack.c.l.bf16 %v68
    %v236 = vunpack.c.l.bf16 %v69
    %v237 = vadd.f32 %v233, %v235
    %v238 = vadd.f32 %v234, %v236
    %vm239 = vcmask 130048
    %v240 = vsel %vm239, %v237, -inf
    %241 = vmax.xlane.f32.xlu0 %v240
    %v242 = vpop.xlane.xlu0 %241
    %v243 = vsel %vm239, %v238, -inf
    %244 = vmax.xlane.f32.xlu0 %v243
    %v245 = vpop.xlane.xlu0 %244
    %v246 = vsub.f32 %v237, %v242
    %v247 = vsub.f32 %v238, %v245
    %v248 = vmul.f32 %v246, 1.442695
    %v249 = vpow.pop %v248
    %v250 = vmul.f32 %v247, 1.442695
    %v251 = vpow.pop %v250
    %v252 = vsel %vm239, %v249, 0.0
    %253 = vadd.xlane.f32.xlu0 %v252
    %v254 = vpop.xlane.xlu0 %253
    %v255 = vsel %vm239, %v251, 0.0
    %256 = vadd.xlane.f32.xlu0 %v255
    %v257 = vpop.xlane.xlu0 %256
    %v258 = vrcp.pop %v254
    %v259 = vrcp.pop %v257
    %v260 = vmul.f32 %v249, %v258
    %v261 = vmul.f32 %v251, %v259
    %v262 = vpack.c.bf16 %v261, %v260
    %v263 = vperm.slane %v89, 0
    %v265 = vsel %vm239, %v262, 0
    %267 = vmatpush.bf16.msra.mxu0 0
    %268 = vmatpush.bf16.msra.mxu0 0
    %269 = vmatpush.bf16.msra.mxu0 0
    %270 = vmatpush.bf16.msra.mxu0 0
    %271 = vmatpush.bf16.msra.mxu0 0
    %272 = vmatpush.bf16.msra.mxu0 0
    %273 = vmatpush.bf16.msra.mxu0 0
    %274 = vmatpush.bf16.msra.mxu0 %v117
    %275 = vmatmul.bf16.gmra.mxu0 %v265
    %v276 = vpop.f32.mrf.mxu0
    %v277 = vadd.f32 %v263, %v276
    %v278 = vpop.f32.mrf.mxu0
    %v279 = vadd.f32 %v263, %v278
    %280 = vdwg.mxu0
    %v281 = vmax.f32 %v277, 0.0
    %v282 = vmax.f32 %v279, 0.0
    %v283 = vpack.c.bf16 %v282, %v281
    %v284 = vld [vmem:[#allocation7] sm:$0xf]
    %v285 = vld [vmem:[#allocation7 + $0x18] sm:$0xf]
    %v286 = vld [vmem:[#allocation7 + $0x30] sm:$0xf]
    %v287 = vld [vmem:[#allocation7 + $0x48] sm:$0xf]
    %v288 = vld [vmem:[#allocation7 + $0x60] sm:$0xf]
    %v289 = vld [vmem:[#allocation7 + $0x78] sm:$0xf]
    %v290 = vld [vmem:[#allocation7 + $0x90] sm:$0xf]
    %v291 = vld [vmem:[#allocation7 + $0xa8] sm:$0xf]
    %v292 = vld [vmem:[#allocation7 + $0xc0] sm:$0xf]
    %v293 = vld [vmem:[#allocation7 + $0xd8] sm:$0xf]
    %v294 = vld [vmem:[#allocation7 + $0xf0] sm:$0xf]
    %v295 = vld [vmem:[#allocation7 + $0x108] sm:$0xf]
    %v296 = vld [vmem:[#allocation7 + $0x120] sm:$0xf]
    %v297 = vld [vmem:[#allocation7 + $0x138] sm:$0xf]
    %v298 = vld [vmem:[#allocation7 + $0x150] sm:$0xf]
    %v299 = vld [vmem:[#allocation7 + $0x168] sm:$0xf]
    %v300 = vld [vmem:[%s5 + $0x1] sm:$0x1]
    %v317 = vunpack.c.l.b16 %v284
    %v318 = vunpack.c.l.b16 %v285
    %v319 = vunpack.c.l.b16 %v286
    %v320 = vunpack.c.l.b16 %v287
    %v321 = vunpack.c.l.b16 %v288
    %v322 = vunpack.c.l.b16 %v289
    %v323 = vunpack.c.l.b16 %v290
    %v324 = vunpack.c.l.b16 %v291
    %v325 = vunpack.c.l.b16 %v292
    %v326 = vunpack.c.l.b16 %v293
    %v327 = vunpack.c.l.b16 %v294
    %v328 = vunpack.c.l.b16 %v295
    %v329 = vunpack.c.l.b16 %v296
    %v330 = vunpack.c.l.b16 %v297
    %v331 = vunpack.c.l.b16 %v298
    %v332 = vunpack.c.l.b16 %v299
    %v333 = vpack.c.b16 %v318, %v317
    %v334 = vpack.c.b16 %v320, %v319
    %v335 = vpack.c.b16 %v322, %v321
    %v336 = vpack.c.b16 %v324, %v323
    %v337 = vpack.c.b16 %v326, %v325
    %v338 = vpack.c.b16 %v328, %v327
    %v339 = vpack.c.b16 %v330, %v329
    %v340 = vpack.c.b16 %v332, %v331
    %349 = vmatpush.bf16.msra.mxu0 %v340
    %350 = vmatpush.bf16.msra.mxu0 %v339
    %351 = vmatpush.bf16.msra.mxu0 %v338
    %352 = vmatpush.bf16.msra.mxu0 %v337
    %353 = vmatpush.bf16.msra.mxu0 %v336
    %354 = vmatpush.bf16.msra.mxu0 %v335
    %355 = vmatpush.bf16.msra.mxu0 %v334
    %356 = vmatpush.bf16.msra.mxu0 %v333
    %357 = vmatmul.bf16.gmra.mxu0 %v283
    %v358 = vpop.f32.mrf.mxu0
    %v359 = vadd.f32 0.0, %v358
    %v360 = vpop.f32.mrf.mxu0
    %v361 = vadd.f32 0.0, %v360
    %362 = vdwg.mxu0
    %v363 = vpack.c.bf16 %v361, %v359
    %364 = vmatpush.bf16.msra.mxu0 %v157
    %365 = vmatpush.bf16.msra.mxu0 %v156
    %366 = vmatpush.bf16.msra.mxu0 %v155
    %367 = vmatpush.bf16.msra.mxu0 %v154
    %368 = vmatpush.bf16.msra.mxu0 %v153
    %369 = vmatpush.bf16.msra.mxu0 %v152
    %370 = vmatpush.bf16.msra.mxu0 %v151
    %371 = vmatpush.bf16.msra.mxu0 %v150
    %372 = vmatmul.bf16.gmra.mxu0 %v363
    %v373 = vpop.f32.mrf.mxu0
    %v374 = vadd.f32 0.0, %v373
    %v375 = vpop.f32.mrf.mxu0
    %v376 = vadd.f32 0.0, %v375
    %377 = vdwg.mxu0
    %380 = vrot.lane.b32.xlu0 %v374, 125
    %v381 = vpop.permute.xlu0 %380
    %382 = vrot.lane.b32.xlu0 %v376, 125
    %v383 = vpop.permute.xlu0 %382
    %386 = vxpose.xlu0.b32.start [1/16] %v381, 128
    %387 = vxpose.xlu0.b32.cont [2/16] %v383, 128
    %388 = vxpose.xlu0.b32.cont [3/16] 0.0, 128
    %389 = vxpose.xlu0.b32.cont [4/16] 0.0, 128
    %390 = vxpose.xlu0.b32.cont [5/16] 0.0, 128
    %391 = vxpose.xlu0.b32.cont [6/16] 0.0, 128
    %392 = vxpose.xlu0.b32.cont [7/16] 0.0, 128
    %393 = vxpose.xlu0.b32.cont [8/16] 0.0, 128
    %394 = vxpose.xlu0.b32.cont [9/16] 0.0, 128
    %395 = vxpose.xlu0.b32.cont [10/16] 0.0, 128
    %396 = vxpose.xlu0.b32.cont [11/16] 0.0, 128
    %397 = vxpose.xlu0.b32.cont [12/16] 0.0, 128
    %398 = vxpose.xlu0.b32.cont [13/16] 0.0, 128
    %399 = vxpose.xlu0.b32.cont [14/16] 0.0, 128
    %400 = vxpose.xlu0.b32.cont [15/16] 0.0, 128
    %401 = vxpose.xlu0.b32.end [16/16] 0.0, 128
    %v402 = vpop.trf.xlu0
    %v403 = vpop.trf.xlu0
    %v404 = vpop.trf.xlu0
    %v405 = vpop.trf.xlu0
    %v406 = vpop.trf.xlu0
    %v407 = vpop.trf.xlu0
    %v408 = vpop.trf.xlu0
    %v409 = vpop.trf.xlu0
    %v410 = vpop.trf.xlu0
    %v411 = vpop.trf.xlu0
    %v412 = vpop.trf.xlu0
    %v413 = vpop.trf.xlu0
    %v414 = vpop.trf.xlu0
    %v415 = vpop.trf.xlu0
    %v416 = vpop.trf.xlu0
    %v417 = vpop.trf.xlu0
    %418 = vset.pattern.permute.xlu0 2
    %419 = vperm.xlu0 %418, %v374
    %v420 = vpop.permute.xlu0 %419
    %422 = vset.pattern.permute.xlu0 2
    %423 = vperm.xlu0 %422, %v376
    %v424 = vpop.permute.xlu0 %423
    %v426 = vperm.slane %v402, 0
    %v427 = vadd.f32 %v420, %v426
    %v428 = vadd.f32 %v424, %v426
    %v429 = vmul.f32 %v427, 0.2
    %v430 = vmul.f32 %v428, 0.2
    %v431 = vmax.f32 %v427, %v429
    %v432 = vmax.f32 %v428, %v430
    %v433 = vadd.f32 %v431, %v235
    %v434 = vadd.f32 %v432, %v236
    %v435 = vsel %vm239, %v433, -inf
    %436 = vmax.xlane.f32.xlu0 %v435
    %v437 = vpop.xlane.xlu0 %436
    %v438 = vsel %vm239, %v434, -inf
    %439 = vmax.xlane.f32.xlu0 %v438
    %v440 = vpop.xlane.xlu0 %439
    %v441 = vsub.f32 %v433, %v437
    %v442 = vsub.f32 %v434, %v440
    %v443 = vmul.f32 %v441, 1.442695
    %v444 = vpow.pop %v443
    %v445 = vmul.f32 %v442, 1.442695
    %v446 = vpow.pop %v445
    %v447 = vsel %vm239, %v444, 0.0
    %448 = vadd.xlane.f32.xlu0 %v447
    %v449 = vpop.xlane.xlu0 %448
    %v450 = vsel %vm239, %v446, 0.0
    %451 = vadd.xlane.f32.xlu0 %v450
    %v452 = vpop.xlane.xlu0 %451
    %v453 = vrcp.pop %v449
    %v454 = vrcp.pop %v452
    %v455 = vmul.f32 %v444, %v453
    %v456 = vmul.f32 %v446, %v454
    %v457 = vpack.c.bf16 %v456, %v455
    %v458 = vperm.slane %v300, 0
    %v460 = vsel %vm239, %v457, 0
    %462 = vmatpush.bf16.msra.mxu0 0
    %463 = vmatpush.bf16.msra.mxu0 0
    %464 = vmatpush.bf16.msra.mxu0 0
    %465 = vmatpush.bf16.msra.mxu0 0
    %466 = vmatpush.bf16.msra.mxu0 0
    %467 = vmatpush.bf16.msra.mxu0 0
    %468 = vmatpush.bf16.msra.mxu0 0
    %469 = vmatpush.bf16.msra.mxu0 %v363
    %470 = vmatmul.bf16.gmra.mxu0 %v460
    %v471 = vpop.f32.mrf.mxu0
    %v472 = vadd.f32 %v458, %v471
    %v473 = vpop.f32.mrf.mxu0
    %v474 = vadd.f32 %v458, %v473
    %475 = vdwg.mxu0
    %v476 = vmax.f32 %v472, 0.0
    %v477 = vmax.f32 %v474, 0.0
    %v478 = vpack.c.bf16 %v477, %v476
    %v479 = vld [vmem:[#allocation7 + $0x4] sm:$0xff]
    %v480 = vld [vmem:[#allocation7 + $0xc] sm:$0xf]
    %v481 = vld [vmem:[#allocation7 + $0x1c] sm:$0xff]
    %v482 = vld [vmem:[#allocation7 + $0x24] sm:$0xf]
    %v483 = vld [vmem:[#allocation7 + $0x34] sm:$0xff]
    %v484 = vld [vmem:[#allocation7 + $0x3c] sm:$0xf]
    %v485 = vld [vmem:[#allocation7 + $0x4c] sm:$0xff]
    %v486 = vld [vmem:[#allocation7 + $0x54] sm:$0xf]
    %v487 = vld [vmem:[#allocation7 + $0x64] sm:$0xff]
    %v488 = vld [vmem:[#allocation7 + $0x6c] sm:$0xf]
    %v489 = vld [vmem:[#allocation7 + $0x7c] sm:$0xff]
    %v490 = vld [vmem:[#allocation7 + $0x84] sm:$0xf]
    %v491 = vld [vmem:[#allocation7 + $0x94] sm:$0xff]
    %v492 = vld [vmem:[#allocation7 + $0x9c] sm:$0xf]
    %v493 = vld [vmem:[#allocation7 + $0xac] sm:$0xff]
    %v494 = vld [vmem:[#allocation7 + $0xb4] sm:$0xf]
    %v495 = vld [vmem:[#allocation7 + $0xc4] sm:$0xff]
    %v496 = vld [vmem:[#allocation7 + $0xcc] sm:$0xf]
    %v497 = vld [vmem:[#allocation7 + $0xdc] sm:$0xff]
    %v498 = vld [vmem:[#allocation7 + $0xe4] sm:$0xf]
    %v499 = vld [vmem:[#allocation7 + $0xf4] sm:$0xff]
    %v500 = vld [vmem:[#allocation7 + $0xfc] sm:$0xf]
    %v501 = vld [vmem:[#allocation7 + $0x10c] sm:$0xff]
    %v502 = vld [vmem:[#allocation7 + $0x114] sm:$0xf]
    %v503 = vld [vmem:[#allocation7 + $0x124] sm:$0xff]
    %v504 = vld [vmem:[#allocation7 + $0x12c] sm:$0xf]
    %v505 = vld [vmem:[#allocation7 + $0x13c] sm:$0xff]
    %v506 = vld [vmem:[#allocation7 + $0x144] sm:$0xf]
    %v507 = vld [vmem:[#allocation7 + $0x154] sm:$0xff]
    %v508 = vld [vmem:[#allocation7 + $0x15c] sm:$0xf]
    %v509 = vld [vmem:[#allocation7 + $0x16c] sm:$0xff]
    %v510 = vld [vmem:[#allocation7 + $0x174] sm:$0xf]
    %v543 = vunpack.c.l.b16 %v479
    %v544 = vunpack.c.h.b16 %v479
    %v545 = vunpack.c.l.b16 %v480
    %v546 = vunpack.c.l.b16 %v481
    %v547 = vunpack.c.h.b16 %v481
    %v548 = vunpack.c.l.b16 %v482
    %v549 = vunpack.c.l.b16 %v483
    %v550 = vunpack.c.h.b16 %v483
    %v551 = vunpack.c.l.b16 %v484
    %v552 = vunpack.c.l.b16 %v485
    %v553 = vunpack.c.h.b16 %v485
    %v554 = vunpack.c.l.b16 %v486
    %v555 = vunpack.c.l.b16 %v487
    %v556 = vunpack.c.h.b16 %v487
    %v557 = vunpack.c.l.b16 %v488
    %v558 = vunpack.c.l.b16 %v489
    %v559 = vunpack.c.h.b16 %v489
    %v560 = vunpack.c.l.b16 %v490
    %v561 = vunpack.c.l.b16 %v491
    %v562 = vunpack.c.h.b16 %v491
    %v563 = vunpack.c.l.b16 %v492
    %v564 = vunpack.c.l.b16 %v493
    %v565 = vunpack.c.h.b16 %v493
    %v566 = vunpack.c.l.b16 %v494
    %v567 = vunpack.c.l.b16 %v495
    %v568 = vunpack.c.h.b16 %v495
    %v569 = vunpack.c.l.b16 %v496
    %v570 = vunpack.c.l.b16 %v497
    %v571 = vunpack.c.h.b16 %v497
    %v572 = vunpack.c.l.b16 %v498
    %v573 = vunpack.c.l.b16 %v499
    %v574 = vunpack.c.h.b16 %v499
    %v575 = vunpack.c.l.b16 %v500
    %v576 = vunpack.c.l.b16 %v501
    %v577 = vunpack.c.h.b16 %v501
    %v578 = vunpack.c.l.b16 %v502
    %v579 = vunpack.c.l.b16 %v503
    %v580 = vunpack.c.h.b16 %v503
    %v581 = vunpack.c.l.b16 %v504
    %v582 = vunpack.c.l.b16 %v505
    %v583 = vunpack.c.h.b16 %v505
    %v584 = vunpack.c.l.b16 %v506
    %v585 = vunpack.c.l.b16 %v507
    %v586 = vunpack.c.h.b16 %v507
    %v587 = vunpack.c.l.b16 %v508
    %v588 = vunpack.c.l.b16 %v509
    %v589 = vunpack.c.h.b16 %v509
    %v590 = vunpack.c.l.b16 %v510
    %v591 = vpack.c.b16 %v546, %v543
    %v592 = vpack.c.b16 %v547, %v544
    %v593 = vpack.c.b16 %v548, %v545
    %v594 = vpack.c.b16 %v552, %v549
    %v595 = vpack.c.b16 %v553, %v550
    %v596 = vpack.c.b16 %v554, %v551
    %v597 = vpack.c.b16 %v558, %v555
    %v598 = vpack.c.b16 %v559, %v556
    %v599 = vpack.c.b16 %v560, %v557
    %v600 = vpack.c.b16 %v564, %v561
    %v601 = vpack.c.b16 %v565, %v562
    %v602 = vpack.c.b16 %v566, %v563
    %v603 = vpack.c.b16 %v570, %v567
    %v604 = vpack.c.b16 %v571, %v568
    %v605 = vpack.c.b16 %v572, %v569
    %v606 = vpack.c.b16 %v576, %v573
    %v607 = vpack.c.b16 %v577, %v574
    %v608 = vpack.c.b16 %v578, %v575
    %v609 = vpack.c.b16 %v582, %v579
    %v610 = vpack.c.b16 %v583, %v580
    %v611 = vpack.c.b16 %v584, %v581
    %v612 = vpack.c.b16 %v588, %v585
    %v613 = vpack.c.b16 %v589, %v586
    %v614 = vpack.c.b16 %v590, %v587
    %639 = vmatpush.bf16.msra.mxu0 %v612
    %640 = vmatpush.bf16.msra.mxu0 %v609
    %641 = vmatpush.bf16.msra.mxu0 %v606
    %642 = vmatpush.bf16.msra.mxu0 %v603
    %643 = vmatpush.bf16.msra.mxu0 %v600
    %644 = vmatpush.bf16.msra.mxu0 %v597
    %645 = vmatpush.bf16.msra.mxu0 %v594
    %646 = vmatpush.bf16.msra.mxu0 %v591
    %647 = vmatmul.bf16.gmra.mxu0 %v478
    %v648 = vpop.f32.mrf.mxu0
    %v649 = vadd.f32 0.0, %v648
    %v650 = vpop.f32.mrf.mxu0
    %v651 = vadd.f32 0.0, %v650
    %652 = vdwg.mxu0
    %653 = vmatpush.bf16.msra.mxu0 %v613
    %654 = vmatpush.bf16.msra.mxu0 %v610
    %655 = vmatpush.bf16.msra.mxu0 %v607
    %656 = vmatpush.bf16.msra.mxu0 %v604
    %657 = vmatpush.bf16.msra.mxu0 %v601
    %658 = vmatpush.bf16.msra.mxu0 %v598
    %659 = vmatpush.bf16.msra.mxu0 %v595
    %660 = vmatpush.bf16.msra.mxu0 %v592
    %661 = vmatmul.bf16.gmra.mxu0 %v478
    %v662 = vpop.f32.mrf.mxu0
    %v663 = vadd.f32 0.0, %v662
    %v664 = vpop.f32.mrf.mxu0
    %v665 = vadd.f32 0.0, %v664
    %666 = vdwg.mxu0
    %667 = vmatpush.bf16.msra.mxu0 %v614
    %668 = vmatpush.bf16.msra.mxu0 %v611
    %669 = vmatpush.bf16.msra.mxu0 %v608
    %670 = vmatpush.bf16.msra.mxu0 %v605
    %671 = vmatpush.bf16.msra.mxu0 %v602
    %672 = vmatpush.bf16.msra.mxu0 %v599
    %673 = vmatpush.bf16.msra.mxu0 %v596
    %674 = vmatpush.bf16.msra.mxu0 %v593
    %675 = vmatmul.bf16.gmra.mxu0 %v478
    %v676 = vpop.f32.mrf.mxu0
    %v677 = vadd.f32 0.0, %v676
    %v678 = vpop.f32.mrf.mxu0
    %v679 = vadd.f32 0.0, %v678
    %680 = vdwg.mxu0
    %v681 = vld [vmem:[%s5 + $0x2] sm:$0x1]
    %v682 = vperm.slane %v681, 0
    %v683 = vadd.f32 %v649, %v682
    %v684 = vadd.f32 %v651, %v682
    %v685 = vxor.u32 %v683, 2147483648
    %v686 = vxor.u32 %v684, 2147483648
    %v687 = vmul.f32 %v685, 1.442695
    %v688 = vpow.pop %v687
    %v689 = vmul.f32 %v686, 1.442695
    %v690 = vpow.pop %v689
    %v691 = vadd.f32 %v688, 1.0
    %v692 = vadd.f32 %v690, 1.0
    %v693 = vrcp.pop %v691
    %v694 = vmul.f32 %v691, %v693
    %v695 = vsub.f32 1.0, %v694
    %v696 = vmul.f32 %v693, %v695
    %v697 = vadd.f32 %v693, %v696
    %vm698 = vweird.f32 %v691
    %vm699 = vweird.f32 %v693
    %vm700 = vmor %vm698, %vm699
    %v701 = vsel %vm700, %v693, %v697
    %v702 = vand.u32 2147483647, %v691
    %vm703 = vcmp.eq.f32.partialorder %v702, 8.507059e+37
    %v704 = vand.u32 %v691, 2147483648
    %v705 = vor.u32 1.1754944e-38, %v704
    %v706 = vsel %vm703, %v705, %v701
    %v707 = vmul.f32 1.0, %v706
    %v708 = vrcp.pop %v692
    %v709 = vmul.f32 %v692, %v708
    %v710 = vsub.f32 1.0, %v709
    %v711 = vmul.f32 %v708, %v710
    %v712 = vadd.f32 %v708, %v711
    %vm713 = vweird.f32 %v692
    %vm714 = vweird.f32 %v708
    %vm715 = vmor %vm713, %vm714
    %v716 = vsel %vm715, %v708, %v712
    %v717 = vand.u32 2147483647, %v692
    %vm718 = vcmp.eq.f32.partialorder %v717, 8.507059e+37
    %v719 = vand.u32 %v692, 2147483648
    %v720 = vor.u32 1.1754944e-38, %v719
    %v721 = vsel %vm718, %v720, %v716
    %v722 = vmul.f32 1.0, %v721
    %v723 = vld [vmem:[%s5 + $0x3] sm:$0x1]
    %v724 = vperm.slane %v723, 0
    %v725 = vadd.f32 %v663, %v724
    %v726 = vadd.f32 %v665, %v724
    %v727 = vxor.u32 %v725, 2147483648
    %v728 = vxor.u32 %v726, 2147483648
    %v729 = vmul.f32 %v727, 1.442695
    %v730 = vpow.pop %v729
    %v731 = vmul.f32 %v728, 1.442695
    %v732 = vpow.pop %v731
    %v733 = vadd.f32 %v730, 1.0
    %v734 = vadd.f32 %v732, 1.0
    %v735 = vrcp.pop %v733
    %v736 = vmul.f32 %v733, %v735
    %v737 = vsub.f32 1.0, %v736
    %v738 = vmul.f32 %v735, %v737
    %v739 = vadd.f32 %v735, %v738
    %vm740 = vweird.f32 %v733
    %vm741 = vweird.f32 %v735
    %vm742 = vmor %vm740, %vm741
    %v743 = vsel %vm742, %v735, %v739
    %v744 = vand.u32 2147483647, %v733
    %vm745 = vcmp.eq.f32.partialorder %v744, 8.507059e+37
    %v746 = vand.u32 %v733, 2147483648
    %v747 = vor.u32 1.1754944e-38, %v746
    %v748 = vsel %vm745, %v747, %v743
    %v749 = vmul.f32 1.0, %v748
    %v750 = vrcp.pop %v734
    %v751 = vmul.f32 %v734, %v750
    %v752 = vsub.f32 1.0, %v751
    %v753 = vmul.f32 %v750, %v752
    %v754 = vadd.f32 %v750, %v753
    %vm755 = vweird.f32 %v734
    %vm756 = vweird.f32 %v750
    %vm757 = vmor %vm755, %vm756
    %v758 = vsel %vm757, %v750, %v754
    %v759 = vand.u32 2147483647, %v734
    %vm760 = vcmp.eq.f32.partialorder %v759, 8.507059e+37
    %v761 = vand.u32 %v734, 2147483648
    %v762 = vor.u32 1.1754944e-38, %v761
    %v763 = vsel %vm760, %v762, %v758
    %v764 = vmul.f32 1.0, %v763
    %v765 = vld [vmem:[%s5 + $0x4] sm:$0x1]
    %v766 = vperm.slane %v765, 0
    %v767 = vadd.f32 %v677, %v766
    %v768 = vadd.f32 %v679, %v766
    %v769 = vld [vmem:[%s5 + $0x5] sm:$0x1]
    %v770 = vperm.slane %v769, 0
    %v771 = vmul.f32 %v707, %v770
    %v772 = vmul.f32 %v722, %v770
    %v773 = vadd.f32 %v767, %v771
    %v774 = vadd.f32 %v768, %v772
    %v775 = vtanh.pop %v773
    %v776 = vtanh.pop %v774
    %v777 = vsub.f32 1.0, %v749
    %v778 = vsub.f32 1.0, %v764
    %v779 = vmul.f32 %v777, %v775
    %v780 = vmul.f32 %v778, %v776
    %v781 = vld [vmem:[#allocation2] sm:$0x3]
    %v783 = vsel %vm239, %v781, 0
    %785 = vmatpush.msra.mxu0 0.0
    %786 = vmatpush.msra.mxu0 0.0
    %787 = vmatpush.msra.mxu0 0.0
    %788 = vmatpush.msra.mxu0 0.0
    %789 = vmatpush.msra.mxu0 0.0
    %790 = vmatpush.msra.mxu0 0.0
    %791 = vmatpush.msra.mxu0 0.0
    %792 = vmatpush.msra.mxu0 0.0
    %793 = vmatpush.msra.mxu0 0.0
    %794 = vmatpush.msra.mxu0 0.0
    %795 = vmatpush.msra.mxu0 0.0
    %796 = vmatpush.msra.mxu0 0.0
    %797 = vmatpush.msra.mxu0 0.0
    %798 = vmatpush.msra.mxu0 0.0
    %799 = vmatpush.msra.mxu0 %v780
    %800 = vmatpush.msra.mxu0 %v779
    %801 = vmatmul.f32.gmra.mxu0 %v783
    %v802 = vpop.f32.mrf.mxu0
    %v803 = vadd.f32 0.0, %v802
    %804 = vdwg.mxu0
    %vm805 = vcmask 1041408
    %v806 = vsel %vm805, %v803, 0.0
    %v807 = vrot.slane %v806, 4
    %v808 = vadd.f32 %v806, %v807
    %v809 = vrot.slane %v808, 2
    %v810 = vadd.f32 %v808, %v809
    %v811 = vrot.slane %v810, 1
    %v812 = vadd.f32 %v810, %v811
    %v813 = vmul.f32 %v812, 0.5
    %v814 = vpack.c.bf16 %v813, %v813
    %v815 = vld [vmem:[#allocation7 + $0x10] sm:$0xf]
    %v816 = vld [vmem:[#allocation7 + $0x28] sm:$0xf]
    %v817 = vld [vmem:[#allocation7 + $0x40] sm:$0xf]
    %v818 = vld [vmem:[#allocation7 + $0x58] sm:$0xf]
    %v819 = vld [vmem:[#allocation7 + $0x70] sm:$0xf]
    %v820 = vld [vmem:[#allocation7 + $0x88] sm:$0xf]
    %v821 = vld [vmem:[#allocation7 + $0xa0] sm:$0xf]
    %v822 = vld [vmem:[#allocation7 + $0xb8] sm:$0xf]
    %v823 = vld [vmem:[#allocation7 + $0xd0] sm:$0xf]
    %v824 = vld [vmem:[#allocation7 + $0xe8] sm:$0xf]
    %v825 = vld [vmem:[#allocation7 + $0x100] sm:$0xf]
    %v826 = vld [vmem:[#allocation7 + $0x118] sm:$0xf]
    %v827 = vld [vmem:[#allocation7 + $0x130] sm:$0xf]
    %v828 = vld [vmem:[#allocation7 + $0x148] sm:$0xf]
    %v829 = vld [vmem:[#allocation7 + $0x160] sm:$0xf]
    %v830 = vld [vmem:[#allocation7 + $0x178] sm:$0xf]
    %v831 = vld [vmem:[%s5 + $0x6] sm:$0x1]
    %v848 = vunpack.c.l.b16 %v815
    %v849 = vunpack.c.l.b16 %v816
    %v850 = vunpack.c.l.b16 %v817
    %v851 = vunpack.c.l.b16 %v818
    %v852 = vunpack.c.l.b16 %v819
    %v853 = vunpack.c.l.b16 %v820
    %v854 = vunpack.c.l.b16 %v821
    %v855 = vunpack.c.l.b16 %v822
    %v856 = vunpack.c.l.b16 %v823
    %v857 = vunpack.c.l.b16 %v824
    %v858 = vunpack.c.l.b16 %v825
    %v859 = vunpack.c.l.b16 %v826
    %v860 = vunpack.c.l.b16 %v827
    %v861 = vunpack.c.l.b16 %v828
    %v862 = vunpack.c.l.b16 %v829
    %v863 = vunpack.c.l.b16 %v830
    %v864 = vpack.c.b16 %v849, %v848
    %v865 = vpack.c.b16 %v851, %v850
    %v866 = vpack.c.b16 %v853, %v852
    %v867 = vpack.c.b16 %v855, %v854
    %v868 = vpack.c.b16 %v857, %v856
    %v869 = vpack.c.b16 %v859, %v858
    %v870 = vpack.c.b16 %v861, %v860
    %v871 = vpack.c.b16 %v863, %v862
    %880 = vmatpush.bf16.msra.mxu0 %v871
    %881 = vmatpush.bf16.msra.mxu0 %v870
    %882 = vmatpush.bf16.msra.mxu0 %v869
    %883 = vmatpush.bf16.msra.mxu0 %v868
    %884 = vmatpush.bf16.msra.mxu0 %v867
    %885 = vmatpush.bf16.msra.mxu0 %v866
    %886 = vmatpush.bf16.msra.mxu0 %v865
    %887 = vmatpush.bf16.msra.mxu0 %v864
    %888 = vmatmul.bf16.gmra.mxu0 %v814
    %v889 = vpop.f32.mrf.mxu0
    %v890 = vadd.f32 %v831, %v889
    %v891 = vpop.f32.mrf.mxu0
    %892 = vdwg.mxu0
    %v893 = vmax.f32 %v890, 0.0
    %894 = vst [vmem:[#allocation8] sm:$0x3] %v803
    %v895 = vperm.slane %v893, 0
    %896 = vst [vmem:[#allocation8 + $0x2] sm:$0x3] %v895
    // Predicated region
    $region38: #{tpu_custom_call.1} parent=1 // pred_check
      _
    $region39: #{tpu_custom_call.1} parent=1 // pred_check_branch
      %898 = sbr.rel (0) target = $region41
    $region40: #{tpu_custom_call.1} parent=1 // pred_region
      %900 = vsyncadd [#allocation4], 0
      %s902 = sshll.u32 [#allocation8], 4
      %s903 = int_to_ptr.vmem [resolvable:$true] %s902
      %s904 = sshll.u32 %s6, 4
      %s905 = int_to_ptr.hbm [resolvable:$true] %s904
      %907 = dma.vmem_to_hbm [thread:$0]  %s903, 64, %s905, [#allocation4]
    $region41: #{tpu_custom_call.1} parent=1 // pred_fallthru
      _
    // Predicated region
    $region42: #{tpu_custom_call.1} parent=1 // pred_check
      _
    $region43: #{tpu_custom_call.1} parent=1 // pred_check_branch
      %909 = sbr.rel (0) target = $region45
    $region44: #{tpu_custom_call.1} parent=1 // pred_region
      %911 = dma.done [#allocation4], 64
    $region45: #{tpu_custom_call.1} parent=1 // pred_fallthru
      _
    %912 = vsyncpa [#allocation3], 1
    %913 = vsyncpa [#allocation6], 1
    %914 = vsyncpa [#allocation4], 1

</llo_original>
